<compile_context>
chip_gen: v5e
topology: v5e:2x2
jax: 0.10.0
libtpu: 0.0.40
codegen_flags: <defaults>
</compile_context>

<pallas_src>
import math

import jax
import jax.numpy as jnp
import numpy as np
from jax.experimental import pallas as pl
from jax.experimental.pallas import tpu as pltpu


def _round_up(n, m):
    return ((n + m - 1) // m) * m


def _cdiv(a, b):
    return (a + b - 1) // b


def _relukan_kernel(x_ref, expand_ref, plo_ref, phi_ref, wt_ref, b_ref, ot_ref):
    # x_ref     : (bb, I)     raw input block (batch tile, NOT pre-expanded)
    # expand_ref: (I, P_pad)  one-hot lane-expansion matrix E[i, q] = (q % I == i)
    # plo/phi   : (1, P_pad)  phases flattened in (gk, i) order, zero-padded
    # wt_ref    : (O, P_pad)  conv weight in the same (gk, i) flat order, * r^2
    # b_ref     : (O, 1)      conv bias
    # ot_ref    : (O, bb)     transposed output block (batch on the lane axis)
    x = x_ref[...]                                              # (bb, I)
    # In-kernel GK-fold lane expansion: column q of xe is x[:, q % I].  Done as
    # an exact 0/1 f32 matmul so it lowers on every generation.
    # TODO(synk): swap for an XLU lane-tile (jnp.concatenate([x]*GK_pad, -1))
    # once unaligned lane-concat lowering is verified on all target chips.
    xe = jnp.dot(x, expand_ref[...],
                 preferred_element_type=jnp.float32)            # (bb, P_pad)
    x1 = jnp.maximum(xe - plo_ref[...], 0.0)
    x2 = jnp.maximum(phi_ref[...] - xe, 0.0)
    t = x1 * x2
    basis = t * t                                               # r^2 folded into wt
    # Single MXU matmul over the flat contraction axis ("NT" form):
    #   (O, P_pad) x (bb, P_pad)^T -> (O, bb)
    acc = jax.lax.dot_general(
        wt_ref[...], basis,
        dimension_numbers=(((1,), (1,)), ((), ())),
        preferred_element_type=jnp.float32)
    ot_ref[...] = acc + b_ref[...]                              # (O,1) broadcasts over lanes


def relukan_forward(x, phase_low, phase_height, conv_w, conv_b, *, g, k,
                    block_b=1024):
    """x: (B, input_size, 1) f32 -> (B, output_size, 1) f32."""
    B = x.shape[0]
    I, GK = phase_low.shape
    assert GK == g + k
    O = conv_w.shape[0]
    r = 4.0 * g * g / ((k + 1) * (k + 1))

    # ---- flat pairing & lane padding (all wrapper-side, tiny tensors) ------
    # PyTorch pairs basis and weight by row-major flat index p:
    #   basis.reshape(B, I*GK)[:, p]  <->  conv_w.reshape(O, GK*I)[:, p]
    # i.e. basis element (i, gk)  (p = i*GK + gk) pairs with
    # conv_w.reshape(O, I, GK)[:, i, gk].  We reorder the sum to q = gk*I + i
    # so the in-kernel x expansion is a simple I-lane tile repeated GK times.
    lane_mult = 128 // math.gcd(I, 128)
    GK_pad = _round_up(GK, lane_mult)
    if GK_pad > 4 * GK:            # pathological input_size: skip lane alignment
        GK_pad = GK
    P_pad = GK_pad * I

    x2d = x.reshape(B, I).astype(jnp.float32)

    def to_flat_gk_i(p2d):
        # (I, GK) -> (GK_pad, I) in (gk, i) order, zero-padded -> (1, P_pad).
        p = jnp.transpose(p2d.astype(jnp.float32))              # (GK, I)
        p = jnp.pad(p, ((0, GK_pad - GK), (0, 0)))
        return p.reshape(1, P_pad)

    plo = to_flat_gk_i(phase_low)
    phi = to_flat_gk_i(phase_height)

    # Weight paired with basis element (i, gk) is conv_w.reshape(O, I, GK)[:, i, gk]
    # (a reshape, NOT a transpose -- this is what the PyTorch reshape implies).
    w_pair = conv_w.reshape(O, I, GK).astype(jnp.float32)
    w_gk_i = jnp.transpose(w_pair, (0, 2, 1))                   # (O, GK, I): q = gk*I + i
    w_gk_i = jnp.pad(w_gk_i, ((0, 0), (0, GK_pad - GK), (0, 0)))
    # r^2 folded into the weight (bit-exact when r is a power of two, e.g.
    # g=4,k=3 -> r=4; otherwise only the rounding order differs vs. PyTorch).
    wt = w_gk_i.reshape(O, P_pad) * jnp.float32(r) * jnp.float32(r)
    bias = conv_b.reshape(O, 1).astype(jnp.float32)

    # One-hot lane-expansion matrix: E[i, q] = 1 iff q % I == i.  Invariant,
    # read once (I*P_pad*4 bytes), lives resident in VMEM.
    expand = jnp.asarray(
        (np.arange(P_pad)[None, :] % I == np.arange(I)[:, None]).astype(np.float32))

    # ---- batch tiling ------------------------------------------------------
    # Large tiles amortize per-grid-step pipeline overhead (~0.35us/step); bb
    # is the lane dim of the transposed output block, so keep it a multiple of
    # 128 for unmasked stores.
    bb = _round_up(min(block_b, max(B, 1)), 128)
    if B >= 256:
        # Keep >= 2 grid steps so v7x's two TensorCores can split the
        # "parallel" batch axis (no effect on v5e/v6e: single TC).
        bb = min(bb, _round_up(_cdiv(B, 2), 128))
    B_pad = _round_up(B, bb)
    if B_pad != B:
        # NOTE: padded rows produce garbage (nonzero) output columns; they are
        # sliced off below and must never be consumed from the raw output.
        x2d = jnp.pad(x2d, ((0, B_pad - B), (0, 0)))
    grid = (B_pad // bb,)

    cost = pl.CostEstimate(
        flops=int(2 * B_pad * P_pad * (O + I) + 5 * B_pad * P_pad),
        transcendentals=0,
        bytes_accessed=int(4 * (B_pad * I + I * P_pad + 2 * P_pad
                                + O * P_pad + O + O * B_pad)))

    out_t = pl.pallas_call(
        _relukan_kernel,
        out_shape=jax.ShapeDtypeStruct((O, B_pad), jnp.float32),
        grid=grid,
        in_specs=[
            pl.BlockSpec((bb, I), lambda b: (b, 0)),        # x (raw, batch-tiled)
            pl.BlockSpec((I, P_pad), lambda b: (0, 0)),     # expansion   (invariant)
            pl.BlockSpec((1, P_pad), lambda b: (0, 0)),     # phase_low   (invariant)
            pl.BlockSpec((1, P_pad), lambda b: (0, 0)),     # phase_height(invariant)
            pl.BlockSpec((O, P_pad), lambda b: (0, 0)),     # conv weight (invariant)
            pl.BlockSpec((O, 1), lambda b: (0, 0)),         # bias        (invariant)
        ],
        out_specs=pl.BlockSpec((O, bb), lambda b: (0, b)),
        compiler_params=pltpu.CompilerParams(
            dimension_semantics=("parallel",)),             # batch axis is parallel
        cost_estimate=cost,
    )(x2d, expand, plo, phi, wt, bias)

    # (O, B_pad) -> (B, O, 1).  TODO(synk): let the consumer take the (O, B)
    # layout directly to skip this extra O*B*4-byte HBM round-trip.
    return out_t[:, :B].T.reshape(B, O, 1)


def relukan_reference(x, phase_low, phase_height, conv_w, conv_b, *, g, k):
    """Pure-JAX mirror of the PyTorch forward (for verification)."""
    B = x.shape[0]
    O = conv_w.shape[0]
    r = 4.0 * g * g / ((k + 1) * (k + 1))
    x1 = jnp.maximum(x - phase_low, 0.0)             # (B, I, G+K)
    x2 = jnp.maximum(phase_height - x, 0.0)
    xx = x1 * x2 * r
    xx = xx * xx
    xx = xx.reshape(B, 1, g + k, phase_low.shape[0])  # reshape, not transpose!
    out = jnp.einsum("bcgi,ocgi->bo", xx, conv_w) + conv_b
    return out.reshape(B, O, 1)


if __name__ == "__main__":
    # Module hyperparameters (small, consistent with __init__).
    input_size, output_size = 16, 8
    g, k = 4, 3
    GK = g + k
    B = 16

    # Deterministic parameter init (matches the shapes in __init__).
    phase_low_np = np.stack(
        [np.arange(-k, g, dtype=np.float32) / g for _ in range(input_size)])
    phase_height_np = phase_low_np + (k + 1) / g
    phase_low = jnp.asarray(phase_low_np, jnp.float32)        # (I, G+K)
    phase_height = jnp.asarray(phase_height_np, jnp.float32)  # (I, G+K)

    key = jax.random.PRNGKey(0)
    kx, kw, kb = jax.random.split(key, 3)
    conv_w = 0.1 * jax.random.normal(kw, (output_size, 1, GK, input_size),
                                     jnp.float32)
    conv_b = 0.1 * jax.random.normal(kb, (output_size,), jnp.float32)

    # Input in [0, 1] as the ReLUKAN basis expects; PyTorch layout (B, I, 1).
    x = jax.random.uniform(kx, (B, input_size, 1), jnp.float32)

    out = relukan_forward(x, phase_low, phase_height, conv_w, conv_b, g=g, k=k)
    out = jax.block_until_ready(out)

    ref = relukan_reference(x, phase_low, phase_height, conv_w, conv_b,
                            g=g, k=k)
    assert out.shape == (B, output_size, 1)
    np.testing.assert_allclose(np.asarray(out), np.asarray(ref),
                               rtol=1e-5, atol=1e-5)
    print("KERNEL_OK")
</pallas_src>

<mosaic_0001>
module attributes {stable_mosaic.version = 11 : i64} {
  func.func @_relukan_kernel(%arg0: i32, %arg1: memref<128x16xf32, #tpu.memory_space<vmem>>, %arg2: memref<16x128xf32, #tpu.memory_space<vmem>>, %arg3: memref<1x128xf32, #tpu.memory_space<vmem>>, %arg4: memref<1x128xf32, #tpu.memory_space<vmem>>, %arg5: memref<8x128xf32, #tpu.memory_space<vmem>>, %arg6: memref<8x1xf32, #tpu.memory_space<vmem>>, %arg7: memref<8x128xf32, #tpu.memory_space<vmem>>) attributes {dimension_semantics = [#tpu.dimension_semantics<parallel>], iteration_bounds = array<i64: 1>, scalar_prefetch = 0 : i64, scratch_operands = 0 : i64, tpu.core_type = #tpu.core_type<tc>, window_params = [{transform_indices = @transform_0, window_bounds = array<i64: 128, 16>}, {pipeline_mode = #tpu.pipeline_mode<synchronous>, transform_indices = @transform_1, window_bounds = array<i64: 16, 128>}, {pipeline_mode = #tpu.pipeline_mode<synchronous>, transform_indices = @transform_2, window_bounds = array<i64: 1, 128>}, {pipeline_mode = #tpu.pipeline_mode<synchronous>, transform_indices = @transform_3, window_bounds = array<i64: 1, 128>}, {pipeline_mode = #tpu.pipeline_mode<synchronous>, transform_indices = @transform_4, window_bounds = array<i64: 8, 128>}, {pipeline_mode = #tpu.pipeline_mode<synchronous>, transform_indices = @transform_5, window_bounds = array<i64: 8, 1>}, {transform_indices = @transform_6, window_bounds = array<i64: 8, 128>}]} {
    %c0 = arith.constant 0 : index
    %c0_0 = arith.constant 0 : index
    %0 = vector.load %arg1[%c0, %c0_0] : memref<128x16xf32, #tpu.memory_space<vmem>>, vector<128x16xf32>
    %c0_1 = arith.constant 0 : index
    %c0_2 = arith.constant 0 : index
    %1 = vector.load %arg2[%c0_1, %c0_2] : memref<16x128xf32, #tpu.memory_space<vmem>>, vector<16x128xf32>
    %cst = arith.constant dense<0.000000e+00> : vector<128x128xf32>
    %2 = tpu.matmul %0, %1, %cst {dimension_numbers = #tpu.dot_dimension_numbers<[1], [0], [0], [1], [0, 0, 1, 1], [], []>} : vector<128x16xf32>, vector<16x128xf32>, vector<128x128xf32> -> vector<128x128xf32>
    %c0_3 = arith.constant 0 : index
    %c0_4 = arith.constant 0 : index
    %3 = vector.load %arg3[%c0_3, %c0_4] : memref<1x128xf32, #tpu.memory_space<vmem>>, vector<1x128xf32>
    %4 = vector.broadcast %3 : vector<1x128xf32> to vector<128x128xf32>
    %5 = arith.subf %2, %4 : vector<128x128xf32>
    %cst_5 = arith.constant 0.000000e+00 : f32
    %6 = vector.broadcast %cst_5 : f32 to vector<128x128xf32>
    %7 = arith.maximumf %5, %6 : vector<128x128xf32>
    %c0_6 = arith.constant 0 : index
    %c0_7 = arith.constant 0 : index
    %8 = vector.load %arg4[%c0_6, %c0_7] : memref<1x128xf32, #tpu.memory_space<vmem>>, vector<1x128xf32>
    %9 = vector.broadcast %8 : vector<1x128xf32> to vector<128x128xf32>
    %10 = arith.subf %9, %2 : vector<128x128xf32>
    %cst_8 = arith.constant 0.000000e+00 : f32
    %11 = vector.broadcast %cst_8 : f32 to vector<128x128xf32>
    %12 = arith.maximumf %10, %11 : vector<128x128xf32>
    %13 = arith.mulf %7, %12 : vector<128x128xf32>
    %14 = arith.mulf %13, %13 : vector<128x128xf32>
    %c0_9 = arith.constant 0 : index
    %c0_10 = arith.constant 0 : index
    %15 = vector.load %arg5[%c0_9, %c0_10] : memref<8x128xf32, #tpu.memory_space<vmem>>, vector<8x128xf32>
    %cst_11 = arith.constant dense<0.000000e+00> : vector<8x128xf32>
    %16 = tpu.matmul %15, %14, %cst_11 {dimension_numbers = #tpu.dot_dimension_numbers<[1], [1], [0], [0], [0, 0, 1, 0], [], []>} : vector<8x128xf32>, vector<128x128xf32>, vector<8x128xf32> -> vector<8x128xf32>
    %c0_12 = arith.constant 0 : index
    %c0_13 = arith.constant 0 : index
    %17 = vector.load %arg6[%c0_12, %c0_13] : memref<8x1xf32, #tpu.memory_space<vmem>>, vector<8x1xf32>
    %18 = vector.broadcast %17 : vector<8x1xf32> to vector<8x128xf32>
    %19 = arith.addf %16, %18 : vector<8x128xf32>
    %c0_14 = arith.constant 0 : index
    %c0_15 = arith.constant 0 : index
    %20 = vector.load %arg7[%c0_14, %c0_15] : memref<8x128xf32, #tpu.memory_space<vmem>>, vector<8x128xf32>
    tpu.vector_store %arg7[%c0_14, %c0_15], %19 {strides = array<i32>} : memref<8x128xf32, #tpu.memory_space<vmem>>, vector<8x128xf32>,
    return
  }
  func.func @transform_0(%arg0: i32) -> (i32, i32) {
    %c0_i32 = arith.constant 0 : i32
    %c0_i32_0 = arith.constant 0 : i32
    return %arg0, %c0_i32 : i32, i32
  }
  func.func @transform_1(%arg0: i32) -> (i32, i32) {
    %c0_i32 = arith.constant 0 : i32
    %c0_i32_0 = arith.constant 0 : i32
    %c0_i32_1 = arith.constant 0 : i32
    return %c0_i32, %c0_i32_0 : i32, i32
  }
  func.func @transform_2(%arg0: i32) -> (i32, i32) {
    %c0_i32 = arith.constant 0 : i32
    %c0_i32_0 = arith.constant 0 : i32
    %c0_i32_1 = arith.constant 0 : i32
    return %c0_i32, %c0_i32_0 : i32, i32
  }
  func.func @transform_3(%arg0: i32) -> (i32, i32) {
    %c0_i32 = arith.constant 0 : i32
    %c0_i32_0 = arith.constant 0 : i32
    %c0_i32_1 = arith.constant 0 : i32
    return %c0_i32, %c0_i32_0 : i32, i32
  }
  func.func @transform_4(%arg0: i32) -> (i32, i32) {
    %c0_i32 = arith.constant 0 : i32
    %c0_i32_0 = arith.constant 0 : i32
    %c0_i32_1 = arith.constant 0 : i32
    return %c0_i32, %c0_i32_0 : i32, i32
  }
  func.func @transform_5(%arg0: i32) -> (i32, i32) {
    %c0_i32 = arith.constant 0 : i32
    %c0_i32_0 = arith.constant 0 : i32
    %c0_i32_1 = arith.constant 0 : i32
    return %c0_i32, %c0_i32_0 : i32, i32
  }
  func.func @transform_6(%arg0: i32) -> (i32, i32) {
    %c0_i32 = arith.constant 0 : i32
    %c0_i32_0 = arith.constant 0 : i32
    return %c0_i32, %arg0 : i32, i32
  }
}

</mosaic_0001>

<llo_original>
// kernel: tpu_custom_call.1
$region0: #{tpu_custom_call.1}
  #allocation0 [shape = 'u32[]', space=smem, size = 0x4, offset = 0x4, fixed_abs, tag = 'smem constant byte address 0x4 - core index']
  #allocation1 [shape = 'u32[72,128]{1,0:T(1,128)}', space=vmem, size = 0x9000, scoped, tag = 'internal scratch']
  %s0 = inlined_call_operand.vmem [shape: f32[128,16], index: 0, kind: input, shape index: {}]
  %s1 = inlined_call_operand.vmem [shape: f32[16,128], index: 1, kind: input, shape index: {}]
  %s2 = inlined_call_operand.vmem [shape: f32[1,128], index: 2, kind: input, shape index: {}]
  %s3 = inlined_call_operand.vmem [shape: f32[1,128], index: 3, kind: input, shape index: {}]
  %s4 = inlined_call_operand.vmem [shape: f32[8,128], index: 4, kind: input, shape index: {}]
  %s5 = inlined_call_operand.vmem [shape: f32[8,1], index: 5, kind: input, shape index: {}]
  %s6 = inlined_call_operand.hbm [shape: f32[8,128], index: 6, kind: output, shape index: {}]
  %s7 = sld [smem:[#allocation0]]
  $region34: #{tpu_custom_call.1} parent=0
    _
  %s9 = ssub.s32 1, %s7
  %s10 = scalar_select 0, %s9, %s7
  $region1: #{tpu_custom_call.1} parent=0
    #allocation2 [shape = 'u8[4096]{0}', space=vmem, size = 0x1000, scoped, tag = 'output window, operand 0, single buffered']
    #allocation3 [shape = 's32[1]{0}', space=sflag, size = 0x4, scoped, tag = 'scoped memory for tpu_custom_call.1']
    %11 = vsyncpa [#allocation3], 0
    // Predicated region
    $region2: #{tpu_custom_call.1} parent=1 // pred_check
      _
    $region3: #{tpu_custom_call.1} parent=1 // pred_check_branch
      %13 = sbr.rel (0) target = $region5
    $region4: #{tpu_custom_call.1} parent=1 // pred_region
      _
    $region5: #{tpu_custom_call.1} parent=1 // pred_fallthru
      _
    // Predicated region
    $region6: #{tpu_custom_call.1} parent=1 // pred_check
      _
    $region7: #{tpu_custom_call.1} parent=1 // pred_check_branch
      %15 = sbr.rel (0) target = $region9
    $region8: #{tpu_custom_call.1} parent=1 // pred_region
      _
    $region9: #{tpu_custom_call.1} parent=1 // pred_fallthru
      _
    // Predicated region
    $region10: #{tpu_custom_call.1} parent=1 // pred_check
      _
    $region11: #{tpu_custom_call.1} parent=1 // pred_check_branch
      %17 = sbr.rel (0) target = $region13
    $region12: #{tpu_custom_call.1} parent=1 // pred_region
      _
    $region13: #{tpu_custom_call.1} parent=1 // pred_fallthru
      _
    // Predicated region
    $region14: #{tpu_custom_call.1} parent=1 // pred_check
      _
    $region15: #{tpu_custom_call.1} parent=1 // pred_check_branch
      %19 = sbr.rel (0) target = $region17
    $region16: #{tpu_custom_call.1} parent=1 // pred_region
      _
    $region17: #{tpu_custom_call.1} parent=1 // pred_fallthru
      _
    // Predicated region
    $region18: #{tpu_custom_call.1} parent=1 // pred_check
      _
    $region19: #{tpu_custom_call.1} parent=1 // pred_check_branch
      %21 = sbr.rel (0) target = $region21
    $region20: #{tpu_custom_call.1} parent=1 // pred_region
      _
    $region21: #{tpu_custom_call.1} parent=1 // pred_fallthru
      _
    // Predicated region
    $region22: #{tpu_custom_call.1} parent=1 // pred_check
      _
    $region23: #{tpu_custom_call.1} parent=1 // pred_check_branch
      %23 = sbr.rel (0) target = $region25
    $region24: #{tpu_custom_call.1} parent=1 // pred_region
      _
    $region25: #{tpu_custom_call.1} parent=1 // pred_fallthru
      _
    %v24 = vld [vmem:[%s0] sm:$0xff]
    %v25 = vld [vmem:[%s0 + $0x8] sm:$0xff]
    %v26 = vld [vmem:[%s0 + $0x10] sm:$0xff]
    %v27 = vld [vmem:[%s0 + $0x18] sm:$0xff]
    %v28 = vld [vmem:[%s0 + $0x20] sm:$0xff]
    %v29 = vld [vmem:[%s0 + $0x28] sm:$0xff]
    %v30 = vld [vmem:[%s0 + $0x30] sm:$0xff]
    %v31 = vld [vmem:[%s0 + $0x38] sm:$0xff]
    %v32 = vld [vmem:[%s0 + $0x40] sm:$0xff]
    %v33 = vld [vmem:[%s0 + $0x48] sm:$0xff]
    %v34 = vld [vmem:[%s0 + $0x50] sm:$0xff]
    %v35 = vld [vmem:[%s0 + $0x58] sm:$0xff]
    %v36 = vld [vmem:[%s0 + $0x60] sm:$0xff]
    %v37 = vld [vmem:[%s0 + $0x68] sm:$0xff]
    %v38 = vld [vmem:[%s0 + $0x70] sm:$0xff]
    %v39 = vld [vmem:[%s0 + $0x78] sm:$0xff]
    %v40 = vld [vmem:[%s1] sm:$0xff]
    %v41 = vld [vmem:[%s1 + $0x8] sm:$0xff]
    %vm42 = vcmask 130048
    %v44 = vsel %vm42, %v24, 0
    %v47 = vsel %vm42, %v25, 0
    %v50 = vsel %vm42, %v26, 0
    %v53 = vsel %vm42, %v27, 0
    %v56 = vsel %vm42, %v28, 0
    %v59 = vsel %vm42, %v29, 0
    %v62 = vsel %vm42, %v30, 0
    %v65 = vsel %vm42, %v31, 0
    %v68 = vsel %vm42, %v32, 0
    %v71 = vsel %vm42, %v33, 0
    %v74 = vsel %vm42, %v34, 0
    %v77 = vsel %vm42, %v35, 0
    %v80 = vsel %vm42, %v36, 0
    %v83 = vsel %vm42, %v37, 0
    %v86 = vsel %vm42, %v38, 0
    %v89 = vsel %vm42, %v39, 0
    %91 = vmatpush.msra.mxu0 0.0
    %92 = vmatpush.msra.mxu0 0.0
    %93 = vmatpush.msra.mxu0 0.0
    %94 = vmatpush.msra.mxu0 0.0
    %95 = vmatpush.msra.mxu0 0.0
    %96 = vmatpush.msra.mxu0 0.0
    %97 = vmatpush.msra.mxu0 0.0
    %98 = vmatpush.msra.mxu0 0.0
    %99 = vmatpush.msra.mxu0 0.0
    %100 = vmatpush.msra.mxu0 0.0
    %101 = vmatpush.msra.mxu0 0.0
    %102 = vmatpush.msra.mxu0 0.0
    %103 = vmatpush.msra.mxu0 0.0
    %104 = vmatpush.msra.mxu0 0.0
    %105 = vmatpush.msra.mxu0 %v41
    %106 = vmatpush.msra.mxu0 %v40
    %107 = vmatmul.f32.gmra.mxu0 %v44
    %v108 = vpop.f32.mrf.mxu0
    %v109 = vadd.f32 0.0, %v108
    %110 = vmatmul.f32.gmra.mxu0 %v47
    %v111 = vpop.f32.mrf.mxu0
    %v112 = vadd.f32 0.0, %v111
    %113 = vmatmul.f32.gmra.mxu0 %v50
    %v114 = vpop.f32.mrf.mxu0
    %v115 = vadd.f32 0.0, %v114
    %116 = vmatmul.f32.gmra.mxu0 %v53
    %v117 = vpop.f32.mrf.mxu0
    %v118 = vadd.f32 0.0, %v117
    %119 = vmatmul.f32.gmra.mxu0 %v56
    %v120 = vpop.f32.mrf.mxu0
    %v121 = vadd.f32 0.0, %v120
    %122 = vmatmul.f32.gmra.mxu0 %v59
    %v123 = vpop.f32.mrf.mxu0
    %v124 = vadd.f32 0.0, %v123
    %125 = vmatmul.f32.gmra.mxu0 %v62
    %v126 = vpop.f32.mrf.mxu0
    %v127 = vadd.f32 0.0, %v126
    %128 = vmatmul.f32.gmra.mxu0 %v65
    %v129 = vpop.f32.mrf.mxu0
    %v130 = vadd.f32 0.0, %v129
    %131 = vmatmul.f32.gmra.mxu0 %v68
    %v132 = vpop.f32.mrf.mxu0
    %v133 = vadd.f32 0.0, %v132
    %134 = vmatmul.f32.gmra.mxu0 %v71
    %v135 = vpop.f32.mrf.mxu0
    %v136 = vadd.f32 0.0, %v135
    %137 = vmatmul.f32.gmra.mxu0 %v74
    %v138 = vpop.f32.mrf.mxu0
    %v139 = vadd.f32 0.0, %v138
    %140 = vmatmul.f32.gmra.mxu0 %v77
    %v141 = vpop.f32.mrf.mxu0
    %v142 = vadd.f32 0.0, %v141
    %143 = vmatmul.f32.gmra.mxu0 %v80
    %v144 = vpop.f32.mrf.mxu0
    %v145 = vadd.f32 0.0, %v144
    %146 = vmatmul.f32.gmra.mxu0 %v83
    %v147 = vpop.f32.mrf.mxu0
    %v148 = vadd.f32 0.0, %v147
    %149 = vmatmul.f32.gmra.mxu0 %v86
    %v150 = vpop.f32.mrf.mxu0
    %v151 = vadd.f32 0.0, %v150
    %152 = vmatmul.f32.gmra.mxu0 %v89
    %v153 = vpop.f32.mrf.mxu0
    %v154 = vadd.f32 0.0, %v153
    %155 = vdwg.mxu0
    %v156 = vld [vmem:[%s2] sm:$0x1]
    %v158 = vperm.slane %v156, 0
    %v160 = vsub.f32 %v109, %v158
    %v161 = vsub.f32 %v112, %v158
    %v162 = vsub.f32 %v115, %v158
    %v163 = vsub.f32 %v118, %v158
    %v164 = vsub.f32 %v121, %v158
    %v165 = vsub.f32 %v124, %v158
    %v166 = vsub.f32 %v127, %v158
    %v167 = vsub.f32 %v130, %v158
    %v168 = vsub.f32 %v133, %v158
    %v169 = vsub.f32 %v136, %v158
    %v170 = vsub.f32 %v139, %v158
    %v171 = vsub.f32 %v142, %v158
    %v172 = vsub.f32 %v145, %v158
    %v173 = vsub.f32 %v148, %v158
    %v174 = vsub.f32 %v151, %v158
    %v175 = vsub.f32 %v154, %v158
    %v176 = vmax.f32 %v160, 0.0
    %v177 = vmax.f32 %v161, 0.0
    %v178 = vmax.f32 %v162, 0.0
    %v179 = vmax.f32 %v163, 0.0
    %v180 = vmax.f32 %v164, 0.0
    %v181 = vmax.f32 %v165, 0.0
    %v182 = vmax.f32 %v166, 0.0
    %v183 = vmax.f32 %v167, 0.0
    %v184 = vmax.f32 %v168, 0.0
    %v185 = vmax.f32 %v169, 0.0
    %v186 = vmax.f32 %v170, 0.0
    %v187 = vmax.f32 %v171, 0.0
    %v188 = vmax.f32 %v172, 0.0
    %v189 = vmax.f32 %v173, 0.0
    %v190 = vmax.f32 %v174, 0.0
    %v191 = vmax.f32 %v175, 0.0
    %v192 = vld [vmem:[%s3] sm:$0x1]
    %v194 = vperm.slane %v192, 0
    %v196 = vsub.f32 %v194, %v109
    %v197 = vsub.f32 %v194, %v112
    %v198 = vsub.f32 %v194, %v115
    %v199 = vsub.f32 %v194, %v118
    %v200 = vsub.f32 %v194, %v121
    %v201 = vsub.f32 %v194, %v124
    %v202 = vsub.f32 %v194, %v127
    %v203 = vsub.f32 %v194, %v130
    %v204 = vsub.f32 %v194, %v133
    %v205 = vsub.f32 %v194, %v136
    %v206 = vsub.f32 %v194, %v139
    %v207 = vsub.f32 %v194, %v142
    %v208 = vsub.f32 %v194, %v145
    %v209 = vsub.f32 %v194, %v148
    %v210 = vsub.f32 %v194, %v151
    %v211 = vsub.f32 %v194, %v154
    %v212 = vmax.f32 %v196, 0.0
    %v213 = vmax.f32 %v197, 0.0
    %v214 = vmax.f32 %v198, 0.0
    %v215 = vmax.f32 %v199, 0.0
    %v216 = vmax.f32 %v200, 0.0
    %v217 = vmax.f32 %v201, 0.0
    %v218 = vmax.f32 %v202, 0.0
    %v219 = vmax.f32 %v203, 0.0
    %v220 = vmax.f32 %v204, 0.0
    %v221 = vmax.f32 %v205, 0.0
    %v222 = vmax.f32 %v206, 0.0
    %v223 = vmax.f32 %v207, 0.0
    %v224 = vmax.f32 %v208, 0.0
    %v225 = vmax.f32 %v209, 0.0
    %v226 = vmax.f32 %v210, 0.0
    %v227 = vmax.f32 %v211, 0.0
    %v228 = vmul.f32 %v176, %v212
    %v229 = vmul.f32 %v177, %v213
    %v230 = vmul.f32 %v178, %v214
    %v231 = vmul.f32 %v179, %v215
    %v232 = vmul.f32 %v180, %v216
    %v233 = vmul.f32 %v181, %v217
    %v234 = vmul.f32 %v182, %v218
    %v235 = vmul.f32 %v183, %v219
    %v236 = vmul.f32 %v184, %v220
    %v237 = vmul.f32 %v185, %v221
    %v238 = vmul.f32 %v186, %v222
    %v239 = vmul.f32 %v187, %v223
    %v240 = vmul.f32 %v188, %v224
    %v241 = vmul.f32 %v189, %v225
    %v242 = vmul.f32 %v190, %v226
    %v243 = vmul.f32 %v191, %v227
    %v244 = vmul.f32 %v228, %v228
    %v245 = vmul.f32 %v229, %v229
    %v246 = vmul.f32 %v230, %v230
    %v247 = vmul.f32 %v231, %v231
    %v248 = vmul.f32 %v232, %v232
    %v249 = vmul.f32 %v233, %v233
    %v250 = vmul.f32 %v234, %v234
    %v251 = vmul.f32 %v235, %v235
    %v252 = vmul.f32 %v236, %v236
    %v253 = vmul.f32 %v237, %v237
    %v254 = vmul.f32 %v238, %v238
    %v255 = vmul.f32 %v239, %v239
    %v256 = vmul.f32 %v240, %v240
    %v257 = vmul.f32 %v241, %v241
    %v258 = vmul.f32 %v242, %v242
    %v259 = vmul.f32 %v243, %v243
    %v260 = vld [vmem:[%s4] sm:$0xff]
    %v261 = vld [vmem:[%s5] sm:$0xff]
    %263 = vset.pattern.permute.xlu0 0
    %264 = vperm.xlu0 %263, %v261
    %v265 = vpop.permute.xlu0 %264
    %267 = vmatpush.xpose.msra.mxu0 %v259
    %268 = vmatpush.xpose.msra.mxu0 %v258
    %269 = vmatpush.xpose.msra.mxu0 %v257
    %270 = vmatpush.xpose.msra.mxu0 %v256
    %271 = vmatpush.xpose.msra.mxu0 %v255
    %272 = vmatpush.xpose.msra.mxu0 %v254
    %273 = vmatpush.xpose.msra.mxu0 %v253
    %274 = vmatpush.xpose.msra.mxu0 %v252
    %275 = vmatpush.xpose.msra.mxu0 %v251
    %276 = vmatpush.xpose.msra.mxu0 %v250
    %277 = vmatpush.xpose.msra.mxu0 %v249
    %278 = vmatpush.xpose.msra.mxu0 %v248
    %279 = vmatpush.xpose.msra.mxu0 %v247
    %280 = vmatpush.xpose.msra.mxu0 %v246
    %281 = vmatpush.xpose.msra.mxu0 %v245
    %282 = vmatpush.xpose.msra.mxu0 %v244
    %283 = vmatmul.f32.gmra.mxu0 %v260
    %v284 = vpop.f32.mrf.mxu0
    %v285 = vadd.f32 %v265, %v284
    %286 = vdwg.mxu0
    %287 = vst [vmem:[#allocation2] sm:$0xff] %v285
    // Predicated region
    $region26: #{tpu_custom_call.1} parent=1 // pred_check
      _
    $region27: #{tpu_custom_call.1} parent=1 // pred_check_branch
      %289 = sbr.rel (0) target = $region29
    $region28: #{tpu_custom_call.1} parent=1 // pred_region
      %291 = vsyncadd [#allocation3], 0
      %s293 = sshll.u32 [#allocation2], 4
      %s294 = int_to_ptr.vmem [resolvable:$true] %s293
      %s295 = sshll.u32 %s6, 4
      %s296 = int_to_ptr.hbm [resolvable:$true] %s295
      %298 = dma.vmem_to_hbm [thread:$0]  %s294, 128, %s296, [#allocation3]
    $region29: #{tpu_custom_call.1} parent=1 // pred_fallthru
      _
    // Predicated region
    $region30: #{tpu_custom_call.1} parent=1 // pred_check
      _
    $region31: #{tpu_custom_call.1} parent=1 // pred_check_branch
      %300 = sbr.rel (0) target = $region33
    $region32: #{tpu_custom_call.1} parent=1 // pred_region
      %302 = dma.done [#allocation3], 128
    $region33: #{tpu_custom_call.1} parent=1 // pred_fallthru
      _
    %303 = vsyncpa [#allocation3], 1

</llo_original>
